<compile_context>
chip_gen: v5e
topology: v5e:2x2
jax: 0.10.0
libtpu: 0.0.40
codegen_flags: <defaults>
</compile_context>

<pallas_src>
import functools

import jax
import jax.numpy as jnp
from jax.experimental import pallas as pl
from jax.experimental.pallas import tpu as pltpu


def _soft_attention_kernel(*refs, reverse_attn, has_context, has_mask):
    it = iter(refs)
    h_ref = next(it)                              # (Bb, dim)
    pc_ref = next(it)                             # (Bb, seq_len, dim)
    ctx_ref = next(it) if has_context else None   # (Bb, seq_len, dim) or absent
    mask_ref = next(it) if has_mask else None     # (Bb, seq_len) or absent
    wc_ref = next(it)                             # (Bb, dim)
    attn_ref = next(it)                           # (Bb, seq_len)

    pc = pc_ref[...]                              # native dtype (no f32 copy)
    h3 = h_ref[...][:, None, :]                   # (Bb, 1, dim)

    # scores[b, 0, s] = sum_d h[b, d] * pc[b, s, d]   -- batched MXU contraction
    scores = jnp.einsum("bqd,bsd->bqs", h3, pc,
                        preferred_element_type=jnp.float32)   # (Bb, 1, S) f32
    if reverse_attn:
        scores = -scores
    if has_mask:
        scores = jnp.where(mask_ref[...][:, None, :] == 0, -jnp.inf, scores)
    # NOTE: a fully-masked row yields NaNs, matching the PyTorch module.

    # Numerically stable softmax over seq_len (lane axis).
    m = jnp.max(scores, axis=-1, keepdims=True)
    e = jnp.exp(scores - m)
    denom = jnp.sum(e, axis=-1, keepdims=True)
    inv = pl.reciprocal(denom, approx=True)       # EUP slot (otherwise idle)
    inv = inv * (2.0 - denom * inv)               # one Newton step -> ~f32 accuracy
    attn = e * inv                                # (Bb, 1, S) f32

    ctx = ctx_ref[...] if has_context else pc     # native dtype
    # wc[b, 0, d] = sum_s attn[b, 0, s] * ctx[b, s, d]  -- batched MXU contraction
    wc = jnp.einsum("bqs,bsd->bqd", attn.astype(ctx.dtype), ctx,
                    preferred_element_type=jnp.float32)       # (Bb, 1, D) f32

    wc_ref[...] = wc[:, 0, :].astype(wc_ref.dtype)
    attn_ref[...] = attn[:, 0, :].astype(attn_ref.dtype)


def _vmem_limit_bytes():
    """Generation-aware scoped-VMEM limit: ~3/4 of physical VMEM, capped at
    96 MiB (v5e/v6e: 128 MiB physical; v7x: 64 MiB per TensorCore -> 48 MiB)."""
    cap = 64 * 1024 * 1024  # conservative fallback = v7x per-TC VMEM
    try:
        info = pltpu.get_tpu_info()
        cap = int(getattr(info, "vmem_capacity_bytes", cap)) or cap
    except Exception:
        pass
    return min((cap * 3) // 4, 96 * 1024 * 1024)


def _choose_block_batch(batch, seq_len, dim, itemsize, n_big_streams, vmem_limit):
    """Batch block so that `n_big_streams` double-buffered (Bb, seq_len, dim)
    blocks use at most ~half the scoped VMEM limit, with each buffered block
    capped at ~8 MiB (diminishing returns beyond that)."""
    row_bytes = max(1, seq_len * dim * itemsize)
    budget_big = max(row_bytes, vmem_limit // 2)          # for the big streams only
    per_buf_fit = budget_big // (n_big_streams * 2)       # bytes per stream per buffer
    bb_fit = max(1, per_buf_fit // row_bytes)
    bb = max(1, min(per_buf_fit, 8 * 1024 * 1024) // row_bytes)
    # Prefer >= 2 grid steps so the "parallel" batch axis can shard across both
    # v7x TensorCores (harmless on single-core chips).
    if batch >= 16:
        bb = min(bb, pl.cdiv(batch, 2))
    if bb >= batch:
        return batch
    if bb >= 8:
        return (bb // 8) * 8
    # Block would be < 8 rows: take the whole (small) batch if it fits VMEM,
    # otherwise accept the small block (huge per-row footprint corner case).
    if batch <= bb_fit:
        return batch
    return bb


def soft_attention(h, proj_context, context=None, mask=None,
                   reverse_attn=False, block_batch=None):
    """Pallas implementation of SoftAttention.forward -> (weighted_context, attn).

    `mask`, if given, should be an integer/bool array (it is streamed as-is;
    no extra HBM cast pass is performed in the wrapper)."""
    batch, seq_len, dim = proj_context.shape
    has_context = context is not None
    has_mask = mask is not None
    n_big_streams = 2 if has_context else 1

    itemsize = jnp.dtype(proj_context.dtype).itemsize
    vmem_limit = _vmem_limit_bytes()
    bb = block_batch if block_batch else _choose_block_batch(
        batch, seq_len, dim, itemsize, n_big_streams, vmem_limit)
    grid = (pl.cdiv(batch, bb),)

    in_specs = [
        pl.BlockSpec((bb, dim), lambda b: (b, 0)),                 # h
        pl.BlockSpec((bb, seq_len, dim), lambda b: (b, 0, 0)),     # proj_context
    ]
    inputs = [h, proj_context]
    if has_context:   # only DMA a second (seq_len, dim) stream when it differs
        in_specs.append(pl.BlockSpec((bb, seq_len, dim), lambda b: (b, 0, 0)))
        inputs.append(context)
    if has_mask:      # no dummy all-ones mask stream when mask is None
        in_specs.append(pl.BlockSpec((bb, seq_len), lambda b: (b, 0)))
        inputs.append(mask)

    out_specs = [
        pl.BlockSpec((bb, dim), lambda b: (b, 0)),                 # weighted_context
        pl.BlockSpec((bb, seq_len), lambda b: (b, 0)),             # attn
    ]

    kernel = functools.partial(_soft_attention_kernel,
                               reverse_attn=reverse_attn,
                               has_context=has_context,
                               has_mask=has_mask)

    weighted_context, attn = pl.pallas_call(
        kernel,
        out_shape=(
            jax.ShapeDtypeStruct((batch, dim), h.dtype),
            jax.ShapeDtypeStruct((batch, seq_len), proj_context.dtype),
        ),
        grid_spec=pltpu.PrefetchScalarGridSpec(
            num_scalar_prefetch=0,
            grid=grid,
            in_specs=in_specs,
            out_specs=out_specs,
        ),
        compiler_params=pltpu.CompilerParams(
            dimension_semantics=("parallel",),
            vmem_limit_bytes=vmem_limit,
        ),
    )(*inputs)
    return weighted_context, attn


def _reference(h, proj_context, context=None, mask=None, reverse_attn=False):
    if context is None:
        context = proj_context
    scores = jnp.einsum("bsd,bd->bs", proj_context, h,
                        precision=jax.lax.Precision.HIGHEST)
    if reverse_attn:
        scores = -scores
    if mask is not None:
        scores = jnp.where(mask == 0, -jnp.inf, scores)
    attn = jax.nn.softmax(scores, axis=1)
    wc = jnp.einsum("bs,bsd->bd", attn, context,
                    precision=jax.lax.Precision.HIGHEST)
    return wc, attn


if __name__ == "__main__":
    key = jax.random.PRNGKey(0)
    k_h, k_pc, k_ctx, k_h2, k_pc2 = jax.random.split(key, 5)

    # Small shapes consistent with the module.
    batch, seq_len, dim = 2, 8, 32
    h = jax.random.normal(k_h, (batch, dim), dtype=jnp.float32)
    proj_context = jax.random.normal(k_pc, (batch, seq_len, dim), dtype=jnp.float32)
    context = jax.random.normal(k_ctx, (batch, seq_len, dim), dtype=jnp.float32)
    # Mask (int32, as the kernel streams it unchanged): zero out the last two
    # positions of the second batch row.
    mask = jnp.ones((batch, seq_len), dtype=jnp.int32).at[1, -2:].set(0)

    wc, attn = soft_attention(h, proj_context, context=context, mask=mask,
                              reverse_attn=False)
    jax.block_until_ready((wc, attn))
    wc_r, attn_r = _reference(h, proj_context, context=context, mask=mask,
                              reverse_attn=False)
    assert jnp.allclose(wc, wc_r, atol=1e-4, rtol=1e-4)
    assert jnp.allclose(attn, attn_r, atol=1e-4, rtol=1e-4)

    # context=None / mask=None / reverse_attn=True path
    # (single context DMA stream, no mask stream).
    wc2, attn2 = soft_attention(h, proj_context, context=None, mask=None,
                                reverse_attn=True)
    jax.block_until_ready((wc2, attn2))
    wc2_r, attn2_r = _reference(h, proj_context, context=None, mask=None,
                                reverse_attn=True)
    assert jnp.allclose(wc2, wc2_r, atol=1e-4, rtol=1e-4)
    assert jnp.allclose(attn2, attn2_r, atol=1e-4, rtol=1e-4)

    # Batch-blocked path: multiple grid steps with Bb a multiple of 8.
    b2, s2, d2 = 16, 64, 128
    h3 = jax.random.normal(k_h2, (b2, d2), dtype=jnp.float32)
    pc3 = jax.random.normal(k_pc2, (b2, s2, d2), dtype=jnp.float32)
    mask3 = jnp.ones((b2, s2), dtype=jnp.int32).at[:, -5:].set(0)
    wc3, attn3 = soft_attention(h3, pc3, context=None, mask=mask3, block_batch=8)
    jax.block_until_ready((wc3, attn3))
    wc3_r, attn3_r = _reference(h3, pc3, context=None, mask=mask3)
    assert jnp.allclose(wc3, wc3_r, atol=1e-4, rtol=1e-4)
    assert jnp.allclose(attn3, attn3_r, atol=1e-4, rtol=1e-4)

    # Fully-masked row: NaN attention/weighted_context, matching the PyTorch
    # module's masked_fill_(-inf) -> softmax behavior (documented, not a bug).
    mask_full = jnp.ones((batch, seq_len), dtype=jnp.int32).at[0, :].set(0)
    wc4, attn4 = soft_attention(h, proj_context, context=context, mask=mask_full)
    jax.block_until_ready((wc4, attn4))
    wc4_r, attn4_r = _reference(h, proj_context, context=context, mask=mask_full)
    assert bool(jnp.isnan(attn4[0]).all()) and bool(jnp.isnan(wc4[0]).all())
    assert jnp.allclose(wc4[1], wc4_r[1], atol=1e-4, rtol=1e-4)
    assert jnp.allclose(attn4[1], attn4_r[1], atol=1e-4, rtol=1e-4)

    print("KERNEL_OK")
</pallas_src>

<mosaic_0001>
module attributes {stable_mosaic.version = 11 : i64} {
  func.func @_soft_attention_kernel(%arg0: i32, %arg1: memref<2x32xf32, #tpu.memory_space<vmem>>, %arg2: memref<2x8x32xf32, #tpu.memory_space<vmem>>, %arg3: memref<2x8x32xf32, #tpu.memory_space<vmem>>, %arg4: memref<2x8xi32, #tpu.memory_space<vmem>>, %arg5: memref<2x32xf32, #tpu.memory_space<vmem>>, %arg6: memref<2x8xf32, #tpu.memory_space<vmem>>) attributes {dimension_semantics = [#tpu.dimension_semantics<parallel>], iteration_bounds = array<i64: 1>, scalar_prefetch = 0 : i64, scratch_operands = 0 : i64, tpu.core_type = #tpu.core_type<tc>, window_params = [{transform_indices = @transform_0, window_bounds = array<i64: 2, 32>}, {transform_indices = @transform_1, window_bounds = array<i64: 2, 8, 32>}, {transform_indices = @transform_2, window_bounds = array<i64: 2, 8, 32>}, {transform_indices = @transform_3, window_bounds = array<i64: 2, 8>}, {transform_indices = @transform_4, window_bounds = array<i64: 2, 32>}, {transform_indices = @transform_5, window_bounds = array<i64: 2, 8>}]} {
    %c0 = arith.constant 0 : index
    %c0_0 = arith.constant 0 : index
    %c0_1 = arith.constant 0 : index
    %0 = vector.load %arg2[%c0, %c0_0, %c0_1] : memref<2x8x32xf32, #tpu.memory_space<vmem>>, vector<2x8x32xf32>
    %c0_2 = arith.constant 0 : index
    %c0_3 = arith.constant 0 : index
    %1 = vector.load %arg1[%c0_2, %c0_3] : memref<2x32xf32, #tpu.memory_space<vmem>>, vector<2x32xf32>
    %2 = vector.shape_cast %1 : vector<2x32xf32> to vector<2x1x32xf32>
    "tpu.trace_start"() <{level = 10 : i32, message = "bqd,bsd->bqs"}> : () -> ()
    %cst = arith.constant dense<0.000000e+00> : vector<2x1x8xf32>
    %3 = tpu.matmul %2, %0, %cst {dimension_numbers = #tpu.dot_dimension_numbers<[2], [2], [1], [1], [0, 0, 0, 1, 1, 1], [0], [0]>} : vector<2x1x32xf32>, vector<2x8x32xf32>, vector<2x1x8xf32> -> vector<2x1x8xf32>
    "tpu.trace_stop"() : () -> ()
    %c0_4 = arith.constant 0 : index
    %c0_5 = arith.constant 0 : index
    %4 = vector.load %arg4[%c0_4, %c0_5] : memref<2x8xi32, #tpu.memory_space<vmem>>, vector<2x8xi32>
    %5 = vector.shape_cast %4 : vector<2x8xi32> to vector<2x1x8xi32>
    %c0_i32 = arith.constant 0 : i32
    %6 = vector.broadcast %c0_i32 : i32 to vector<2x1x8xi32>
    %7 = arith.cmpi eq, %5, %6 : vector<2x1x8xi32>
    %cst_6 = arith.constant 0xFF800000 : f32
    %8 = vector.broadcast %cst_6 : f32 to vector<2x1x8xf32>
    %9 = arith.select %7, %8, %3 : vector<2x1x8xi1>, vector<2x1x8xf32>
    %cst_7 = arith.constant dense<0xFF800000> : vector<2x1xf32>
    %10 = vector.multi_reduction <maximumf>, %9, %cst_7 [2] : vector<2x1x8xf32> to vector<2x1xf32>
    %11 = vector.shape_cast %10 : vector<2x1xf32> to vector<2x1x1xf32>
    %12 = vector.broadcast %11 : vector<2x1x1xf32> to vector<2x1x8xf32>
    %13 = arith.subf %9, %12 : vector<2x1x8xf32>
    %14 = math.exp %13 : vector<2x1x8xf32>
    %cst_8 = arith.constant dense<0.000000e+00> : vector<2x1xf32>
    %15 = vector.multi_reduction <add>, %14, %cst_8 [2] : vector<2x1x8xf32> to vector<2x1xf32>
    %16 = vector.shape_cast %15 : vector<2x1xf32> to vector<2x1x1xf32>
    %17 = tpu.reciprocal %16 {approx = true} : vector<2x1x1xf32> -> vector<2x1x1xf32>
    %18 = arith.mulf %16, %17 : vector<2x1x1xf32>
    %cst_9 = arith.constant 2.000000e+00 : f32
    %19 = vector.broadcast %cst_9 : f32 to vector<2x1x1xf32>
    %20 = arith.subf %19, %18 : vector<2x1x1xf32>
    %21 = arith.mulf %17, %20 : vector<2x1x1xf32>
    %22 = vector.broadcast %21 : vector<2x1x1xf32> to vector<2x1x8xf32>
    %23 = arith.mulf %14, %22 : vector<2x1x8xf32>
    %c0_10 = arith.constant 0 : index
    %c0_11 = arith.constant 0 : index
    %c0_12 = arith.constant 0 : index
    %24 = vector.load %arg3[%c0_10, %c0_11, %c0_12] : memref<2x8x32xf32, #tpu.memory_space<vmem>>, vector<2x8x32xf32>
    "tpu.trace_start"() <{level = 10 : i32, message = "bqs,bsd->bqd"}> : () -> ()
    %cst_13 = arith.constant dense<0.000000e+00> : vector<2x1x32xf32>
    %25 = tpu.matmul %23, %24, %cst_13 {dimension_numbers = #tpu.dot_dimension_numbers<[2], [1], [1], [2], [0, 0, 0, 1, 1, 2], [0], [0]>} : vector<2x1x8xf32>, vector<2x8x32xf32>, vector<2x1x32xf32> -> vector<2x1x32xf32>
    "tpu.trace_stop"() : () -> ()
    %26 = vector.shape_cast %25 : vector<2x1x32xf32> to vector<2x32xf32>
    %c0_14 = arith.constant 0 : index
    %c0_15 = arith.constant 0 : index
    %27 = vector.load %arg5[%c0_14, %c0_15] : memref<2x32xf32, #tpu.memory_space<vmem>>, vector<2x32xf32>
    tpu.vector_store %arg5[%c0_14, %c0_15], %26 {strides = array<i32>} : memref<2x32xf32, #tpu.memory_space<vmem>>, vector<2x32xf32>,
    %28 = vector.shape_cast %23 : vector<2x1x8xf32> to vector<2x8xf32>
    %c0_16 = arith.constant 0 : index
    %c0_17 = arith.constant 0 : index
    %29 = vector.load %arg6[%c0_16, %c0_17] : memref<2x8xf32, #tpu.memory_space<vmem>>, vector<2x8xf32>
    tpu.vector_store %arg6[%c0_16, %c0_17], %28 {strides = array<i32>} : memref<2x8xf32, #tpu.memory_space<vmem>>, vector<2x8xf32>,
    return
  }
  func.func @transform_0(%arg0: i32) -> (i32, i32) {
    %c0_i32 = arith.constant 0 : i32
    %c0_i32_0 = arith.constant 0 : i32
    return %arg0, %c0_i32 : i32, i32
  }
  func.func @transform_1(%arg0: i32) -> (i32, i32, i32) {
    %c0_i32 = arith.constant 0 : i32
    %c0_i32_0 = arith.constant 0 : i32
    %c0_i32_1 = arith.constant 0 : i32
    return %arg0, %c0_i32, %c0_i32_0 : i32, i32, i32
  }
  func.func @transform_2(%arg0: i32) -> (i32, i32, i32) {
    %c0_i32 = arith.constant 0 : i32
    %c0_i32_0 = arith.constant 0 : i32
    %c0_i32_1 = arith.constant 0 : i32
    return %arg0, %c0_i32, %c0_i32_0 : i32, i32, i32
  }
  func.func @transform_3(%arg0: i32) -> (i32, i32) {
    %c0_i32 = arith.constant 0 : i32
    %c0_i32_0 = arith.constant 0 : i32
    return %arg0, %c0_i32 : i32, i32
  }
  func.func @transform_4(%arg0: i32) -> (i32, i32) {
    %c0_i32 = arith.constant 0 : i32
    %c0_i32_0 = arith.constant 0 : i32
    return %arg0, %c0_i32 : i32, i32
  }
  func.func @transform_5(%arg0: i32) -> (i32, i32) {
    %c0_i32 = arith.constant 0 : i32
    %c0_i32_0 = arith.constant 0 : i32
    return %arg0, %c0_i32 : i32, i32
  }
}

</mosaic_0001>

<llo_original>
// kernel: tpu_custom_call.1
$region0: #{tpu_custom_call.1}
  #allocation0 [shape = 'u32[]', space=smem, size = 0x4, offset = 0x4, fixed_abs, tag = 'smem constant byte address 0x4 - core index']
  #allocation1 [shape = 'u32[72,128]{1,0:T(1,128)}', space=vmem, size = 0x9000, scoped, tag = 'internal scratch']
  %s0 = inlined_call_operand.hbm [shape: f32[2,32], index: 0, kind: input, shape index: {}]
  %s1 = inlined_call_operand.hbm [shape: f32[2,8,32], index: 1, kind: input, shape index: {}]
  %s2 = inlined_call_operand.hbm [shape: f32[2,8,32], index: 2, kind: input, shape index: {}]
  %s3 = inlined_call_operand.vmem [shape: s32[2,8], index: 3, kind: input, shape index: {}]
  %s4 = inlined_call_operand.hbm [shape: f32[2,32], index: 4, kind: output, shape index: {0}]
  %s5 = inlined_call_operand.hbm [shape: f32[2,8], index: 5, kind: output, shape index: {1}]
  %6 = xla_tuple %s4, %s5
  %s7 = sld [smem:[#allocation0]]
  $region46: #{tpu_custom_call.1} parent=0
    _
  %s9 = ssub.s32 1, %s7
  %s10 = scalar_select 0, %s9, %s7
  $region1: #{tpu_custom_call.1} parent=0
    #allocation2 [shape = 'u8[1024]{0}', space=vmem, size = 0x400, scoped, tag = 'input window, operand 0, single buffered']
    #allocation3 [shape = 's32[1]{0}', space=sflag, size = 0x4, scoped, tag = 'scoped memory for tpu_custom_call.1']
    #allocation4 [shape = 's32[1]{0}', space=sflag, size = 0x4, scoped, tag = 'scoped memory for tpu_custom_call.1']
    #allocation5 [shape = 'u8[8192]{0}', space=vmem, size = 0x2000, scoped, tag = 'input window, operand 1, single buffered']
    #allocation6 [shape = 's32[1]{0}', space=sflag, size = 0x4, scoped, tag = 'scoped memory for tpu_custom_call.1']
    #allocation7 [shape = 'u8[8192]{0}', space=vmem, size = 0x2000, scoped, tag = 'input window, operand 2, single buffered']
    #allocation8 [shape = 'u8[1024]{0}', space=vmem, size = 0x400, scoped, tag = 'output window, operand 0, single buffered']
    #allocation9 [shape = 'u8[1024]{0}', space=vmem, size = 0x400, scoped, tag = 'output window, operand 1, single buffered']
    #allocation10 [shape = 's32[1]{0}', space=sflag, size = 0x4, scoped, tag = 'scoped memory for tpu_custom_call.1']
    %11 = vsyncpa [#allocation3], 0
    %12 = vsyncpa [#allocation6], 0
    %13 = vsyncpa [#allocation4], 0
    %14 = vsyncpa [#allocation10], 0
    // Predicated region
    $region2: #{tpu_custom_call.1} parent=1 // pred_check
      _
    $region3: #{tpu_custom_call.1} parent=1 // pred_check_branch
      %16 = sbr.rel (0) target = $region5
    $region4: #{tpu_custom_call.1} parent=1 // pred_region
      %18 = vsyncadd [#allocation3], 0
      %s20 = sshll.u32 %s0, 4
      %s21 = int_to_ptr.hbm [resolvable:$true] %s20
      %s22 = sshll.u32 [#allocation2], 4
      %s23 = int_to_ptr.vmem [resolvable:$true] %s22
      %25 = dma.hbm_to_vmem [thread:$0]  %s21, 32, %s23, [#allocation3]
    $region5: #{tpu_custom_call.1} parent=1 // pred_fallthru
      _
    // Predicated region
    $region6: #{tpu_custom_call.1} parent=1 // pred_check
      _
    $region7: #{tpu_custom_call.1} parent=1 // pred_check_branch
      %27 = sbr.rel (0) target = $region9
    $region8: #{tpu_custom_call.1} parent=1 // pred_region
      %29 = vsyncadd [#allocation6], 0
      %s30 = sshll.u32 %s1, 4
      %s31 = int_to_ptr.hbm [resolvable:$true] %s30
      %s32 = sshll.u32 [#allocation5], 4
      %s33 = int_to_ptr.vmem [resolvable:$true] %s32
      %38 = dma.hbm_to_vmem [thread:$0]  %s31, 256, %s33, [#allocation6], 128, 128, 8
    $region9: #{tpu_custom_call.1} parent=1 // pred_fallthru
      _
    // Predicated region
    $region10: #{tpu_custom_call.1} parent=1 // pred_check
      _
    $region11: #{tpu_custom_call.1} parent=1 // pred_check_branch
      %40 = sbr.rel (0) target = $region13
    $region12: #{tpu_custom_call.1} parent=1 // pred_region
      %42 = vsyncadd [#allocation6], 0
      %s43 = sshll.u32 %s2, 4
      %s44 = int_to_ptr.hbm [resolvable:$true] %s43
      %s45 = sshll.u32 [#allocation7], 4
      %s46 = int_to_ptr.vmem [resolvable:$true] %s45
      %51 = dma.hbm_to_vmem [thread:$0]  %s44, 256, %s46, [#allocation6], 128, 128, 8
    $region13: #{tpu_custom_call.1} parent=1 // pred_fallthru
      _
    // Predicated region
    $region14: #{tpu_custom_call.1} parent=1 // pred_check
      _
    $region15: #{tpu_custom_call.1} parent=1 // pred_check_branch
      %53 = sbr.rel (0) target = $region17
    $region16: #{tpu_custom_call.1} parent=1 // pred_region
      _
    $region17: #{tpu_custom_call.1} parent=1 // pred_fallthru
      _
    // Predicated region
    $region18: #{tpu_custom_call.1} parent=1 // pred_check
      _
    $region19: #{tpu_custom_call.1} parent=1 // pred_check_branch
      %55 = sbr.rel (0) target = $region21
    $region20: #{tpu_custom_call.1} parent=1 // pred_region
      %57 = dma.done [#allocation3], 32
    $region21: #{tpu_custom_call.1} parent=1 // pred_fallthru
      _
    // Predicated region
    $region22: #{tpu_custom_call.1} parent=1 // pred_check
      _
    $region23: #{tpu_custom_call.1} parent=1 // pred_check_branch
      %59 = sbr.rel (0) target = $region25
    $region24: #{tpu_custom_call.1} parent=1 // pred_region
      %61 = dma.done [#allocation6], 256
    $region25: #{tpu_custom_call.1} parent=1 // pred_fallthru
      _
    // Predicated region
    $region26: #{tpu_custom_call.1} parent=1 // pred_check
      _
    $region27: #{tpu_custom_call.1} parent=1 // pred_check_branch
      %63 = sbr.rel (0) target = $region29
    $region28: #{tpu_custom_call.1} parent=1 // pred_region
      %65 = dma.done [#allocation6], 256
    $region29: #{tpu_custom_call.1} parent=1 // pred_fallthru
      _
    %v66 = vld [vmem:[#allocation5] sm:$0xff]
    %v67 = vld [vmem:[#allocation5 + $0x8] sm:$0xff]
    %v68 = vld [vmem:[#allocation2] sm:$0x3]
    %v70 = vrot.slane %v68, 1
    %vm71 = vcmask 261120
    %v72 = vsel %vm71, %v68, 0
    %v75 = vsel %vm71, %v66, 0
    %77 = vmatpush.xpose.msra.mxu0 0.0
    %78 = vmatpush.xpose.msra.mxu0 0.0
    %79 = vmatpush.xpose.msra.mxu0 0.0
    %80 = vmatpush.xpose.msra.mxu0 0.0
    %81 = vmatpush.xpose.msra.mxu0 0.0
    %82 = vmatpush.xpose.msra.mxu0 0.0
    %83 = vmatpush.xpose.msra.mxu0 0.0
    %84 = vmatpush.xpose.msra.mxu0 0.0
    %85 = vmatpush.xpose.msra.mxu0 0.0
    %86 = vmatpush.xpose.msra.mxu0 0.0
    %87 = vmatpush.xpose.msra.mxu0 0.0
    %88 = vmatpush.xpose.msra.mxu0 0.0
    %89 = vmatpush.xpose.msra.mxu0 0.0
    %90 = vmatpush.xpose.msra.mxu0 0.0
    %91 = vmatpush.xpose.msra.mxu0 0.0
    %92 = vmatpush.xpose.msra.mxu0 %v75
    %93 = vmatmul.f32.gmra.mxu0 %v72
    %v94 = vpop.f32.mrf.mxu0
    %v95 = vadd.f32 0.0, %v94
    %96 = vdwg.mxu0
    %v97 = vsel %vm71, %v70, 0
    %v100 = vsel %vm71, %v67, 0
    %102 = vmatpush.xpose.msra.mxu0 0.0
    %103 = vmatpush.xpose.msra.mxu0 0.0
    %104 = vmatpush.xpose.msra.mxu0 0.0
    %105 = vmatpush.xpose.msra.mxu0 0.0
    %106 = vmatpush.xpose.msra.mxu0 0.0
    %107 = vmatpush.xpose.msra.mxu0 0.0
    %108 = vmatpush.xpose.msra.mxu0 0.0
    %109 = vmatpush.xpose.msra.mxu0 0.0
    %110 = vmatpush.xpose.msra.mxu0 0.0
    %111 = vmatpush.xpose.msra.mxu0 0.0
    %112 = vmatpush.xpose.msra.mxu0 0.0
    %113 = vmatpush.xpose.msra.mxu0 0.0
    %114 = vmatpush.xpose.msra.mxu0 0.0
    %115 = vmatpush.xpose.msra.mxu0 0.0
    %116 = vmatpush.xpose.msra.mxu0 0.0
    %117 = vmatpush.xpose.msra.mxu0 %v100
    %118 = vmatmul.f32.gmra.mxu0 %v97
    %v119 = vpop.f32.mrf.mxu0
    %v120 = vadd.f32 0.0, %v119
    %121 = vdwg.mxu0
    %v122 = vld [vmem:[%s3] sm:$0x3]
    %v123 = vrot.slane %v122, 1
    %vm124 = vcmp.eq.s32.totalorder %v122, 0
    %vm125 = vcmp.eq.s32.totalorder %v123, 0
    %v126 = vsel %vm124, -inf, %v95
    %v127 = vsel %vm125, -inf, %v120
    %vm128 = vcmask 57344
    %v129 = vsel %vm128, %v126, -inf
    %130 = vmax.xlane.f32.xlu0 %v129
    %v131 = vpop.xlane.xlu0 %130
    %v132 = vsel %vm128, %v127, -inf
    %133 = vmax.xlane.f32.xlu0 %v132
    %v134 = vpop.xlane.xlu0 %133
    %v135 = vsub.f32 %v126, %v131
    %v136 = vsub.f32 %v127, %v134
    %v137 = vmul.f32 %v135, 1.442695
    %v138 = vpow.pop %v137
    %v139 = vmul.f32 %v136, 1.442695
    %v140 = vpow.pop %v139
    %v141 = vsel %vm128, %v138, 0.0
    %142 = vadd.xlane.f32.xlu0 %v141
    %v143 = vpop.xlane.xlu0 %142
    %v144 = vsel %vm128, %v140, 0.0
    %145 = vadd.xlane.f32.xlu0 %v144
    %v146 = vpop.xlane.xlu0 %145
    %v147 = vrcp.pop %v143
    %v148 = vrcp.pop %v146
    %v149 = vmul.f32 %v143, %v147
    %v150 = vmul.f32 %v146, %v148
    %v151 = vsub.f32 2.0, %v149
    %v152 = vsub.f32 2.0, %v150
    %v153 = vmul.f32 %v147, %v151
    %v154 = vmul.f32 %v148, %v152
    %v155 = vmul.f32 %v138, %v153
    %v156 = vmul.f32 %v140, %v154
    %v157 = vld [vmem:[#allocation7] sm:$0xff]
    %v158 = vld [vmem:[#allocation7 + $0x8] sm:$0xff]
    %vm159 = vcmask 64512
    %v161 = vsel %vm159, %v155, 0
    %163 = vmatpush.msra.mxu0 0.0
    %164 = vmatpush.msra.mxu0 0.0
    %165 = vmatpush.msra.mxu0 0.0
    %166 = vmatpush.msra.mxu0 0.0
    %167 = vmatpush.msra.mxu0 0.0
    %168 = vmatpush.msra.mxu0 0.0
    %169 = vmatpush.msra.mxu0 0.0
    %170 = vmatpush.msra.mxu0 0.0
    %171 = vmatpush.msra.mxu0 0.0
    %172 = vmatpush.msra.mxu0 0.0
    %173 = vmatpush.msra.mxu0 0.0
    %174 = vmatpush.msra.mxu0 0.0
    %175 = vmatpush.msra.mxu0 0.0
    %176 = vmatpush.msra.mxu0 0.0
    %177 = vmatpush.msra.mxu0 0.0
    %178 = vmatpush.msra.mxu0 %v157
    %179 = vmatmul.f32.gmra.mxu0 %v161
    %v180 = vpop.f32.mrf.mxu0
    %v181 = vadd.f32 0.0, %v180
    %182 = vdwg.mxu0
    %v184 = vsel %vm159, %v156, 0
    %186 = vmatpush.msra.mxu0 0.0
    %187 = vmatpush.msra.mxu0 0.0
    %188 = vmatpush.msra.mxu0 0.0
    %189 = vmatpush.msra.mxu0 0.0
    %190 = vmatpush.msra.mxu0 0.0
    %191 = vmatpush.msra.mxu0 0.0
    %192 = vmatpush.msra.mxu0 0.0
    %193 = vmatpush.msra.mxu0 0.0
    %194 = vmatpush.msra.mxu0 0.0
    %195 = vmatpush.msra.mxu0 0.0
    %196 = vmatpush.msra.mxu0 0.0
    %197 = vmatpush.msra.mxu0 0.0
    %198 = vmatpush.msra.mxu0 0.0
    %199 = vmatpush.msra.mxu0 0.0
    %200 = vmatpush.msra.mxu0 0.0
    %201 = vmatpush.msra.mxu0 %v158
    %202 = vmatmul.f32.gmra.mxu0 %v184
    %v203 = vpop.f32.mrf.mxu0
    %v204 = vadd.f32 0.0, %v203
    %205 = vdwg.mxu0
    %v208 = vrot.slane %v204, 7
    %vm209 = vcmask 1041409
    %v210 = vsel %vm209, %v208, %v181
    %vm212 = vcmask 254976
    %213 = vst.msk [vmem:[#allocation8] sm:$0x3] %vm212, %v210
    %214 = vst [vmem:[#allocation1] ss:$9 sm:$0xff] %v155
    %s215 = scalar_lea.vmem [#allocation1], 1
    %216 = vst [vmem:[%s215] ss:$9 sm:$0xff] %v156
    %v217 = vld [vmem:[#allocation1] sm:$0xff]
    %vm219 = vcmask 58368
    %220 = vst.msk [vmem:[#allocation9] sm:$0x3] %vm219, %v217
    // Predicated region
    $region30: #{tpu_custom_call.1} parent=1 // pred_check
      _
    $region31: #{tpu_custom_call.1} parent=1 // pred_check_branch
      %222 = sbr.rel (0) target = $region33
    $region32: #{tpu_custom_call.1} parent=1 // pred_region
      %224 = vsyncadd [#allocation4], 0
      %s226 = sshll.u32 [#allocation8], 4
      %s227 = int_to_ptr.vmem [resolvable:$true] %s226
      %s228 = sshll.u32 %s4, 4
      %s229 = int_to_ptr.hbm [resolvable:$true] %s228
      %231 = dma.vmem_to_hbm [thread:$0]  %s227, 32, %s229, [#allocation4]
    $region33: #{tpu_custom_call.1} parent=1 // pred_fallthru
      _
    // Predicated region
    $region34: #{tpu_custom_call.1} parent=1 // pred_check
      _
    $region35: #{tpu_custom_call.1} parent=1 // pred_check_branch
      %233 = sbr.rel (0) target = $region37
    $region36: #{tpu_custom_call.1} parent=1 // pred_region
      %235 = vsyncadd [#allocation10], 0
      %s237 = sshll.u32 [#allocation9], 4
      %s238 = int_to_ptr.vmem [resolvable:$true] %s237
      %s239 = sshll.u32 %s5, 4
      %s240 = int_to_ptr.hbm [resolvable:$true] %s239
      %242 = dma.vmem_to_hbm [thread:$0]  %s238, 32, %s240, [#allocation10]
    $region37: #{tpu_custom_call.1} parent=1 // pred_fallthru
      _
    // Predicated region
    $region38: #{tpu_custom_call.1} parent=1 // pred_check
      _
    $region39: #{tpu_custom_call.1} parent=1 // pred_check_branch
      %244 = sbr.rel (0) target = $region41
    $region40: #{tpu_custom_call.1} parent=1 // pred_region
      %246 = dma.done [#allocation4], 32
    $region41: #{tpu_custom_call.1} parent=1 // pred_fallthru
      _
    // Predicated region
    $region42: #{tpu_custom_call.1} parent=1 // pred_check
      _
    $region43: #{tpu_custom_call.1} parent=1 // pred_check_branch
      %248 = sbr.rel (0) target = $region45
    $region44: #{tpu_custom_call.1} parent=1 // pred_region
      %250 = dma.done [#allocation10], 32
    $region45: #{tpu_custom_call.1} parent=1 // pred_fallthru
      _
    %251 = vsyncpa [#allocation3], 1
    %252 = vsyncpa [#allocation6], 1
    %253 = vsyncpa [#allocation4], 1
    %254 = vsyncpa [#allocation10], 1

</llo_original>
